<compile_context>
chip_gen: v7x
topology: tpu7x:2x2x1
jax: 0.10.0
libtpu: 0.0.40
codegen_flags: <defaults>
</compile_context>

<pallas_src>
import jax
import jax.numpy as jnp
from jax.experimental import pallas as pl
from jax.experimental.pallas import tpu as pltpu


def fused_cross_attn_kernel(kv_ref, ws_ref, bs_ref, wv_ref, bv_ref,
                            gt_ref, wo_ref, bo_ref, o_ref):
    """One batch element, all 4 attention modules fused.

    kv_ref : (1, T, 4C)   the 4 kv tensors concatenated on the feature axis
    ws_ref : (4C, G)      folded query/K/scale score weights (G = 4*num_heads)
    bs_ref : (1, G)       folded score bias
    wv_ref : (4C, 4C)     block-diagonal V projection (y = x @ W layout)
    bv_ref : (1, 4C)
    gt_ref : (G, 4C)      group -> lane indicator (expands softmax weights)
    wo_ref : (4C, 4C)     block-diagonal out-projection
    bo_ref : (1, 4C)
    o_ref  : (1, T, 4C)
    """
    T = kv_ref.shape[1]
    C4 = kv_ref.shape[2]

    kv = kv_ref[0]                                                   # (T, 4C)

    # Scores of the single (pre-projected, pre-scaled) query row against every
    # key position, for every (module, head) group: one MXU matmul.
    s = jnp.dot(kv, ws_ref[...],
                preferred_element_type=jnp.float32) + bs_ref[...]    # (T, G)

    # Softmax over the key axis (axis 0), per (module, head) group.
    m = jnp.max(s, axis=0, keepdims=True)
    e = jnp.exp(s - m)
    p = e / jnp.sum(e, axis=0, keepdims=True)                        # (T, G)

    # Fused block-diagonal V projection.
    vp = jnp.dot(kv, wv_ref[...],
                 preferred_element_type=jnp.float32) + bv_ref[...]   # (T, 4C)

    # Expand group weights back to value lanes, then reduce over keys.
    pe = jnp.dot(p, gt_ref[...], preferred_element_type=jnp.float32) # (T, 4C)
    attn = jnp.sum(pe * vp, axis=0, keepdims=True)                   # (1, 4C)

    # Fused block-diagonal out-projection -> concatenated module outputs.
    out = jnp.dot(attn, wo_ref[...],
                  preferred_element_type=jnp.float32) + bo_ref[...]  # (1, 4C)

    # Every target position shares the same query -> all T rows are identical.
    o_ref[0] = jnp.broadcast_to(out, (T, C4)).astype(o_ref.dtype)


def fused_cross_attention(kv_all, ws, bs, wv_blk, bv_all, gt, wo_blk, bo_all):
    """kv_all (B,T,4C) float32. Returns (B,T,4C) float32."""
    B, T, C4 = kv_all.shape
    G = ws.shape[1]
    return pl.pallas_call(
        fused_cross_attn_kernel,
        out_shape=jax.ShapeDtypeStruct((B, T, C4), jnp.float32),
        grid=(B,),
        in_specs=[
            pl.BlockSpec((1, T, C4), lambda b: (b, 0, 0)),   # fused kv
            pl.BlockSpec((C4, G), lambda b: (0, 0)),         # folded score W
            pl.BlockSpec((1, G), lambda b: (0, 0)),          # folded score b
            pl.BlockSpec((C4, C4), lambda b: (0, 0)),        # block-diag Wv
            pl.BlockSpec((1, C4), lambda b: (0, 0)),         # bv
            pl.BlockSpec((G, C4), lambda b: (0, 0)),         # group->lane expand
            pl.BlockSpec((C4, C4), lambda b: (0, 0)),        # block-diag Wo
            pl.BlockSpec((1, C4), lambda b: (0, 0)),         # bo
        ],
        out_specs=pl.BlockSpec((1, T, C4), lambda b: (b, 0, 0)),
        compiler_params=pltpu.CompilerParams(
            dimension_semantics=("parallel",)),
    )(kv_all, ws, bs, wv_blk, bv_all, gt, wo_blk, bo_all)


class CrossAttentionWithLearnableQueryPallas:
    """JAX/Pallas port of the PyTorch module (4 MHA blocks + learnable query)."""

    def __init__(self, feature_dim, num_heads, key):
        self.feature_dim = feature_dim
        self.num_heads = num_heads
        assert feature_dim % num_heads == 0

        keys = jax.random.split(key, 1 + 4 * 4)
        # nn.Parameter(torch.randn(1, 1, feature_dim))
        self.query = jax.random.normal(keys[0], (1, 1, feature_dim), jnp.float32)

        self.attn_params = []
        for i in range(4):
            k_inw, k_inb, k_ow, k_ob = keys[1 + 4 * i: 1 + 4 * (i + 1)]
            # nn.MultiheadAttention parameterization:
            #   in_proj_weight (3C, C), in_proj_bias (3C,),
            #   out_proj.weight (C, C), out_proj.bias (C,)
            in_proj_w = 0.1 * jax.random.normal(
                k_inw, (3 * feature_dim, feature_dim), jnp.float32)
            in_proj_b = 0.1 * jax.random.normal(k_inb, (3 * feature_dim,), jnp.float32)
            out_proj_w = 0.1 * jax.random.normal(
                k_ow, (feature_dim, feature_dim), jnp.float32)
            out_proj_b = 0.1 * jax.random.normal(k_ob, (feature_dim,), jnp.float32)
            self.attn_params.append((in_proj_w, in_proj_b, out_proj_w, out_proj_b))

        # Parameter preprocessing (done once at init, not per call).
        self._fused = self._build_fused_params()

    def _build_fused_params(self):
        C = self.feature_dim
        H = self.num_heads
        hd = C // H
        C4 = 4 * C
        n_groups = 4 * H
        scale = 1.0 / (hd ** 0.5)

        wq_cols, bqs, bks, bvs, bos = [], [], [], [], []
        wk_blk = jnp.zeros((C4, C4), jnp.float32)
        wv_blk = jnp.zeros((C4, C4), jnp.float32)
        wo_blk = jnp.zeros((C4, C4), jnp.float32)
        for m, (in_w, in_b, out_w, out_b) in enumerate(self.attn_params):
            # PyTorch Linear computes x @ W.T + b; pre-transpose so kernel does x @ W.
            wq = in_w[0 * C:1 * C].T
            wk = in_w[1 * C:2 * C].T
            wv = in_w[2 * C:3 * C].T
            wq_cols.append(wq)
            bqs.append(in_b[0 * C:1 * C])
            bks.append(in_b[1 * C:2 * C])
            bvs.append(in_b[2 * C:3 * C])
            bos.append(out_b)
            sl = slice(m * C, (m + 1) * C)
            wk_blk = wk_blk.at[sl, sl].set(wk)
            wv_blk = wv_blk.at[sl, sl].set(wv)
            wo_blk = wo_blk.at[sl, sl].set(out_w.T)

        wq_all = jnp.concatenate(wq_cols, axis=1)            # (C, 4C)
        bq_all = jnp.concatenate(bqs)                        # (4C,)
        bk_all = jnp.concatenate(bks)                        # (4C,)
        bv_all = jnp.concatenate(bvs).reshape(1, C4)         # (1, 4C)
        bo_all = jnp.concatenate(bos).reshape(1, C4)         # (1, 4C)

        # Projected + scaled query row (depends only on parameters).
        q_vec = self.query.reshape(1, C)
        qp = (q_vec @ wq_all + bq_all) * scale               # (1, 4C)

        # Group indicator: lane d belongs to (module, head) group d // hd.
        d = jnp.arange(C4)
        g = jnp.arange(n_groups)
        G = (d[:, None] // hd == g[None, :]).astype(jnp.float32)   # (4C, G)
        GT = G.T                                                   # (G, 4C)

        # Fold query, K projection and per-head reduction into one matmul:
        #   scores = kv @ Ws + bs   with   Ws = Wk_blk @ (diag(qp) @ G).
        ws = wk_blk @ (qp.reshape(C4, 1) * G)                # (4C, G)
        bs = ((bk_all * qp.reshape(C4)) @ G).reshape(1, n_groups)

        return ws, bs, wv_blk, bv_all, GT, wo_blk, bo_all

    def __call__(self, key_value):
        # Fuse the 4 kv tensors on the feature axis -> lane-dense (B, T, 4C).
        kv_all = jnp.concatenate(key_value, axis=-1)
        return fused_cross_attention(kv_all, *self._fused)

    # ------------------------------------------------------------------ #
    # Pure-JAX reference mirroring the original per-module computation.
    # ------------------------------------------------------------------ #
    def _mha_ref(self, q_bf, kv_bf, params):
        C = self.feature_dim
        H = self.num_heads
        hd = C // H
        in_w, in_b, out_w, out_b = params
        wq, wk, wv = in_w[0:C].T, in_w[C:2 * C].T, in_w[2 * C:3 * C].T
        bq, bk, bv = in_b[0:C], in_b[C:2 * C], in_b[2 * C:3 * C]
        B, T, _ = q_bf.shape
        qp = q_bf @ wq + bq
        kp = kv_bf @ wk + bk
        vp = kv_bf @ wv + bv
        qh = qp.reshape(B, T, H, hd).transpose(0, 2, 1, 3) / jnp.sqrt(hd)
        kh = kp.reshape(B, T, H, hd).transpose(0, 2, 1, 3)
        vh = vp.reshape(B, T, H, hd).transpose(0, 2, 1, 3)
        s = jnp.einsum('bhqd,bhkd->bhqk', qh, kh)
        p = jax.nn.softmax(s, axis=-1)
        o = jnp.einsum('bhqk,bhkd->bhqd', p, vh)
        o = o.transpose(0, 2, 1, 3).reshape(B, T, C)
        return o @ out_w.T + out_b

    def reference(self, key_value):
        B, T, C = key_value[0].shape
        q_bf = jnp.broadcast_to(self.query.reshape(1, 1, C), (B, T, C))
        outputs = [self._mha_ref(q_bf, key_value[i], self.attn_params[i])
                   for i in range(4)]
        return jnp.concatenate(outputs, axis=-1)


if __name__ == "__main__":
    feature_dim = 32
    num_heads = 4
    B, T = 2, 8

    root_key = jax.random.PRNGKey(0)
    param_key, data_key = jax.random.split(root_key)

    model = CrossAttentionWithLearnableQueryPallas(feature_dim, num_heads, param_key)

    data_keys = jax.random.split(data_key, 4)
    key_value = [jax.random.normal(data_keys[i], (B, T, feature_dim), jnp.float32)
                 for i in range(4)]

    out = jax.block_until_ready(model(key_value))
    assert out.shape == (B, T, 4 * feature_dim), out.shape

    ref = model.reference(key_value)
    assert jnp.allclose(out, ref, atol=1e-4, rtol=1e-4), \
        float(jnp.max(jnp.abs(out - ref)))

    print("KERNEL_OK")
</pallas_src>

<mosaic_0001>
module attributes {stable_mosaic.version = 11 : i64} {
  func.func @fused_cross_attn_kernel(%arg0: i32, %arg1: memref<1x8x128xf32, #tpu.memory_space<vmem>>, %arg2: memref<128x16xf32, #tpu.memory_space<vmem>>, %arg3: memref<1x16xf32, #tpu.memory_space<vmem>>, %arg4: memref<128x128xf32, #tpu.memory_space<vmem>>, %arg5: memref<1x128xf32, #tpu.memory_space<vmem>>, %arg6: memref<16x128xf32, #tpu.memory_space<vmem>>, %arg7: memref<128x128xf32, #tpu.memory_space<vmem>>, %arg8: memref<1x128xf32, #tpu.memory_space<vmem>>, %arg9: memref<1x8x128xf32, #tpu.memory_space<vmem>>) attributes {dimension_semantics = [#tpu.dimension_semantics<parallel>], iteration_bounds = array<i64: 2>, scalar_prefetch = 0 : i64, scratch_operands = 0 : i64, tpu.core_type = #tpu.core_type<tc>, window_params = [{transform_indices = @transform_0, window_bounds = array<i64: 1, 8, 128>}, {pipeline_mode = #tpu.pipeline_mode<synchronous>, transform_indices = @transform_1, window_bounds = array<i64: 128, 16>}, {pipeline_mode = #tpu.pipeline_mode<synchronous>, transform_indices = @transform_2, window_bounds = array<i64: 1, 16>}, {pipeline_mode = #tpu.pipeline_mode<synchronous>, transform_indices = @transform_3, window_bounds = array<i64: 128, 128>}, {pipeline_mode = #tpu.pipeline_mode<synchronous>, transform_indices = @transform_4, window_bounds = array<i64: 1, 128>}, {pipeline_mode = #tpu.pipeline_mode<synchronous>, transform_indices = @transform_5, window_bounds = array<i64: 16, 128>}, {pipeline_mode = #tpu.pipeline_mode<synchronous>, transform_indices = @transform_6, window_bounds = array<i64: 128, 128>}, {pipeline_mode = #tpu.pipeline_mode<synchronous>, transform_indices = @transform_7, window_bounds = array<i64: 1, 128>}, {transform_indices = @transform_8, window_bounds = array<i64: 1, 8, 128>}]} {
    %c0 = arith.constant 0 : index
    %c0_0 = arith.constant 0 : index
    %c0_1 = arith.constant 0 : index
    %0 = vector.load %arg1[%c0, %c0_0, %c0_1] : memref<1x8x128xf32, #tpu.memory_space<vmem>>, vector<1x8x128xf32>
    %1 = vector.shape_cast %0 : vector<1x8x128xf32> to vector<8x128xf32>
    %c0_2 = arith.constant 0 : index
    %c0_3 = arith.constant 0 : index
    %2 = vector.load %arg2[%c0_2, %c0_3] : memref<128x16xf32, #tpu.memory_space<vmem>>, vector<128x16xf32>
    %cst = arith.constant dense<0.000000e+00> : vector<8x16xf32>
    %3 = tpu.matmul %1, %2, %cst {dimension_numbers = #tpu.dot_dimension_numbers<[1], [0], [0], [1], [0, 0, 1, 1], [], []>} : vector<8x128xf32>, vector<128x16xf32>, vector<8x16xf32> -> vector<8x16xf32>
    %c0_4 = arith.constant 0 : index
    %c0_5 = arith.constant 0 : index
    %4 = vector.load %arg3[%c0_4, %c0_5] : memref<1x16xf32, #tpu.memory_space<vmem>>, vector<1x16xf32>
    %5 = vector.broadcast %4 : vector<1x16xf32> to vector<8x16xf32>
    %6 = arith.addf %3, %5 : vector<8x16xf32>
    %cst_6 = arith.constant dense<0xFF800000> : vector<16xf32>
    %7 = vector.multi_reduction <maximumf>, %6, %cst_6 [0] : vector<8x16xf32> to vector<16xf32>
    %8 = vector.shape_cast %7 : vector<16xf32> to vector<1x16xf32>
    %9 = vector.broadcast %8 : vector<1x16xf32> to vector<8x16xf32>
    %10 = arith.subf %6, %9 : vector<8x16xf32>
    %11 = math.exp %10 : vector<8x16xf32>
    %cst_7 = arith.constant dense<0.000000e+00> : vector<16xf32>
    %12 = vector.multi_reduction <add>, %11, %cst_7 [0] : vector<8x16xf32> to vector<16xf32>
    %13 = vector.shape_cast %12 : vector<16xf32> to vector<1x16xf32>
    %14 = vector.broadcast %13 : vector<1x16xf32> to vector<8x16xf32>
    %15 = arith.divf %11, %14 : vector<8x16xf32>
    %c0_8 = arith.constant 0 : index
    %c0_9 = arith.constant 0 : index
    %16 = vector.load %arg4[%c0_8, %c0_9] : memref<128x128xf32, #tpu.memory_space<vmem>>, vector<128x128xf32>
    %cst_10 = arith.constant dense<0.000000e+00> : vector<8x128xf32>
    %17 = tpu.matmul %1, %16, %cst_10 {dimension_numbers = #tpu.dot_dimension_numbers<[1], [0], [0], [1], [0, 0, 1, 1], [], []>} : vector<8x128xf32>, vector<128x128xf32>, vector<8x128xf32> -> vector<8x128xf32>
    %c0_11 = arith.constant 0 : index
    %c0_12 = arith.constant 0 : index
    %18 = vector.load %arg5[%c0_11, %c0_12] : memref<1x128xf32, #tpu.memory_space<vmem>>, vector<1x128xf32>
    %19 = vector.broadcast %18 : vector<1x128xf32> to vector<8x128xf32>
    %20 = arith.addf %17, %19 : vector<8x128xf32>
    %c0_13 = arith.constant 0 : index
    %c0_14 = arith.constant 0 : index
    %21 = vector.load %arg6[%c0_13, %c0_14] : memref<16x128xf32, #tpu.memory_space<vmem>>, vector<16x128xf32>
    %cst_15 = arith.constant dense<0.000000e+00> : vector<8x128xf32>
    %22 = tpu.matmul %15, %21, %cst_15 {dimension_numbers = #tpu.dot_dimension_numbers<[1], [0], [0], [1], [0, 0, 1, 1], [], []>} : vector<8x16xf32>, vector<16x128xf32>, vector<8x128xf32> -> vector<8x128xf32>
    %23 = arith.mulf %22, %20 : vector<8x128xf32>
    %cst_16 = arith.constant dense<0.000000e+00> : vector<128xf32>
    %24 = vector.multi_reduction <add>, %23, %cst_16 [0] : vector<8x128xf32> to vector<128xf32>
    %25 = vector.shape_cast %24 : vector<128xf32> to vector<1x128xf32>
    %c0_17 = arith.constant 0 : index
    %c0_18 = arith.constant 0 : index
    %26 = vector.load %arg7[%c0_17, %c0_18] : memref<128x128xf32, #tpu.memory_space<vmem>>, vector<128x128xf32>
    %cst_19 = arith.constant dense<0.000000e+00> : vector<1x128xf32>
    %27 = tpu.matmul %25, %26, %cst_19 {dimension_numbers = #tpu.dot_dimension_numbers<[1], [0], [0], [1], [0, 0, 1, 1], [], []>} : vector<1x128xf32>, vector<128x128xf32>, vector<1x128xf32> -> vector<1x128xf32>
    %c0_20 = arith.constant 0 : index
    %c0_21 = arith.constant 0 : index
    %28 = vector.load %arg8[%c0_20, %c0_21] : memref<1x128xf32, #tpu.memory_space<vmem>>, vector<1x128xf32>
    %29 = arith.addf %27, %28 : vector<1x128xf32>
    %30 = vector.shape_cast %29 : vector<1x128xf32> to vector<1x128xf32>
    %31 = vector.broadcast %30 : vector<1x128xf32> to vector<8x128xf32>
    %c0_22 = arith.constant 0 : index
    %c0_23 = arith.constant 0 : index
    %c0_24 = arith.constant 0 : index
    %32 = vector.load %arg9[%c0_22, %c0_23, %c0_24] : memref<1x8x128xf32, #tpu.memory_space<vmem>>, vector<1x8x128xf32>
    %33 = vector.shape_cast %32 : vector<1x8x128xf32> to vector<8x128xf32>
    %34 = vector.shape_cast %31 : vector<8x128xf32> to vector<1x8x128xf32>
    tpu.vector_store %arg9[%c0_22, %c0_23, %c0_24], %34 {strides = array<i32>} : memref<1x8x128xf32, #tpu.memory_space<vmem>>, vector<1x8x128xf32>,
    return
  }
  func.func @transform_0(%arg0: i32) -> (i32, i32, i32) {
    %c0_i32 = arith.constant 0 : i32
    %c0_i32_0 = arith.constant 0 : i32
    %c0_i32_1 = arith.constant 0 : i32
    return %arg0, %c0_i32, %c0_i32_0 : i32, i32, i32
  }
  func.func @transform_1(%arg0: i32) -> (i32, i32) {
    %c0_i32 = arith.constant 0 : i32
    %c0_i32_0 = arith.constant 0 : i32
    %c0_i32_1 = arith.constant 0 : i32
    return %c0_i32, %c0_i32_0 : i32, i32
  }
  func.func @transform_2(%arg0: i32) -> (i32, i32) {
    %c0_i32 = arith.constant 0 : i32
    %c0_i32_0 = arith.constant 0 : i32
    %c0_i32_1 = arith.constant 0 : i32
    return %c0_i32, %c0_i32_0 : i32, i32
  }
  func.func @transform_3(%arg0: i32) -> (i32, i32) {
    %c0_i32 = arith.constant 0 : i32
    %c0_i32_0 = arith.constant 0 : i32
    %c0_i32_1 = arith.constant 0 : i32
    return %c0_i32, %c0_i32_0 : i32, i32
  }
  func.func @transform_4(%arg0: i32) -> (i32, i32) {
    %c0_i32 = arith.constant 0 : i32
    %c0_i32_0 = arith.constant 0 : i32
    %c0_i32_1 = arith.constant 0 : i32
    return %c0_i32, %c0_i32_0 : i32, i32
  }
  func.func @transform_5(%arg0: i32) -> (i32, i32) {
    %c0_i32 = arith.constant 0 : i32
    %c0_i32_0 = arith.constant 0 : i32
    %c0_i32_1 = arith.constant 0 : i32
    return %c0_i32, %c0_i32_0 : i32, i32
  }
  func.func @transform_6(%arg0: i32) -> (i32, i32) {
    %c0_i32 = arith.constant 0 : i32
    %c0_i32_0 = arith.constant 0 : i32
    %c0_i32_1 = arith.constant 0 : i32
    return %c0_i32, %c0_i32_0 : i32, i32
  }
  func.func @transform_7(%arg0: i32) -> (i32, i32) {
    %c0_i32 = arith.constant 0 : i32
    %c0_i32_0 = arith.constant 0 : i32
    %c0_i32_1 = arith.constant 0 : i32
    return %c0_i32, %c0_i32_0 : i32, i32
  }
  func.func @transform_8(%arg0: i32) -> (i32, i32, i32) {
    %c0_i32 = arith.constant 0 : i32
    %c0_i32_0 = arith.constant 0 : i32
    %c0_i32_1 = arith.constant 0 : i32
    return %arg0, %c0_i32, %c0_i32_0 : i32, i32, i32
  }
}

</mosaic_0001>

<llo_original>
// kernel: tpu_custom_call.1
$region0: #{tpu_custom_call.1}
  #allocation0 [shape = 'u32[]', space=smem, size = 0x4, offset = 0x4, fixed_abs, tag = 'smem constant byte address 0x4 - core index']
  #allocation1 [shape = 'u32[144,128]{1,0:T(1,128)}', space=vmem, size = 0x12000, scoped, tag = 'internal scratch']
  %s0 = inlined_call_operand.vmem [shape: f32[2,8,128], index: 0, kind: input, shape index: {}]
  %s1 = inlined_call_operand.vmem [shape: f32[128,16], index: 1, kind: input, shape index: {}]
  %s2 = inlined_call_operand.vmem [shape: f32[1,16], index: 2, kind: input, shape index: {}]
  %s3 = inlined_call_operand.vmem [shape: f32[128,128], index: 3, kind: input, shape index: {}]
  %s4 = inlined_call_operand.vmem [shape: f32[1,128], index: 4, kind: input, shape index: {}]
  %s5 = inlined_call_operand.vmem [shape: f32[16,128], index: 5, kind: input, shape index: {}]
  %s6 = inlined_call_operand.hbm [shape: f32[128,128], index: 6, kind: input, shape index: {}]
  %s7 = inlined_call_operand.vmem [shape: f32[1,128], index: 7, kind: input, shape index: {}]
  %s8 = inlined_call_operand.hbm [shape: f32[2,8,128], index: 8, kind: output, shape index: {}]
  %s9 = sld [smem:[#allocation0]]
  $region69: #{tpu_custom_call.1} parent=0
    _
  %s11 = ssub.s32 1, %s9
  %s12 = scalar_select 0, %s11, %s9
  $region1: #{tpu_custom_call.1} parent=0
    #allocation2 [shape = 'u8[65536]{0}', space=vmem, size = 0x10000, scoped, tag = 'input window, operand 6, single buffered']
    #allocation3 [shape = 's32[2]{0}', space=sflag, size = 0x8, scoped, tag = 'scoped memory for tpu_custom_call.1']
    #allocation4 [shape = 's32[2]{0}', space=sflag, size = 0x8, scoped, tag = 'scoped memory for tpu_custom_call.1']
    #allocation5 [shape = 'u8[8192]{0}', space=vmem, size = 0x2000, scoped, tag = 'output window, operand 0']
    %13 = vsyncpa [#allocation3], 0
    %14 = vsyncpa [#allocation4], 0
    %s15 = scalar_lea.sflag [#allocation4], 1
    %16 = vsyncpa %s15, 0
    loop: start=0, step=1, limit=4
    $region2: #{tpu_custom_call.1} parent=1 // loop_pre_header
      _
    $region3: #{tpu_custom_call.1} parent=1 // loop_header
      %s18 = sphi 0, %s22
      %p19 = scmp.ge.s32.totalorder %s18, 4
      %s28 = sphi 0, %s30
      %s31 = sphi 0, %s28
      %s32 = sphi 0, %s31
      %s48 = sphi 0, %s32
      %s52 = sphi 0, %s52
      %s54 = sphi 0, %s52
      %s55 = sphi 0, %s54
      %s69 = sphi 0, %s55
      %s73 = sphi 0, %s73
      %s75 = sphi 0, %s73
      %s76 = sphi 0, %s75
      %s90 = sphi 0, %s76
      %s94 = sphi 0, %s94
      %s96 = sphi 0, %s94
      %s97 = sphi 0, %s96
      %s111 = sphi 0, %s97
      %s115 = sphi 0, %s115
      %s117 = sphi 0, %s115
      %s118 = sphi 0, %s117
      %s132 = sphi 0, %s118
      %s136 = sphi 0, %s136
      %s138 = sphi 0, %s136
      %s139 = sphi 0, %s138
      %s153 = sphi 0, %s139
      %s157 = sphi 0, %s157
      %s159 = sphi 0, %s157
      %s160 = sphi 0, %s159
      %s174 = sphi 0, %s160
      %s178 = sphi 0, %s178
      %s180 = sphi 0, %s178
      %s181 = sphi 0, %s180
      %s195 = sphi 0, %s181
      %s201 = sphi 0, %s203
      %s204 = sphi 0, %s201
      %s205 = sphi 0, %s204
      %s221 = sphi 0, %s205
    $region4: #{tpu_custom_call.1} parent=1 // loop_header_branch
      %21 = sbr.rel (%p19) target = $region8
    $region5: #{tpu_custom_call.1} parent=1 // loop_body
      %s23 = ssub.s32 %s18, 1
      %s24 = ssub.s32 %s18, 2
      %s25 = sadd.s32 %s18, 1
      %s26 = ssub.s32 %s18, %s25
      %p27 = scmp.eq.s32.totalorder %s26, 0
      %s29 = sadd.s32 %s28, 1
      %s30 = scalar_select %p27, %s28, %s29
      %p33 = pneg %p27
      %p34 = scmp.eq.s32.totalorder %s18, 1
      %p35 = por %p33, %p34
      %p36 = scmp.ne.s32.totalorder %s28, %s31
      %p37 = scmp.eq.s32.totalorder %s18, 0
      %p38 = por %p36, %p37
      %p39 = scmp.ne.s32.totalorder %s28, %s31
      %p40 = scmp.eq.s32.totalorder %s23, 1
      %p41 = por %p39, %p40
      %p42 = scmp.ne.s32.totalorder %s31, %s32
      %p43 = scmp.eq.s32.totalorder %s23, 0
      %p44 = por %p42, %p43
      %p45 = scmp.ne.s32.totalorder %s31, %s32
      %p46 = scmp.eq.s32.totalorder %s24, 1
      %p47 = por %p45, %p46
      %p49 = scmp.ne.s32.totalorder %s32, %s48
      %p50 = scmp.eq.s32.totalorder %s24, 0
      %p51 = por %p49, %p50
      %s53 = sadd.s32 %s52, 1
      %p56 = scmp.eq.s32.totalorder %s18, 1
      %p57 = scmp.ne.s32.totalorder %s52, %s54
      %p58 = scmp.eq.s32.totalorder %s18, 0
      %p59 = por %p57, %p58
      %p60 = scmp.ne.s32.totalorder %s52, %s54
      %p61 = scmp.eq.s32.totalorder %s23, 1
      %p62 = por %p60, %p61
      %p63 = scmp.ne.s32.totalorder %s54, %s55
      %p64 = scmp.eq.s32.totalorder %s23, 0
      %p65 = por %p63, %p64
      %p66 = scmp.ne.s32.totalorder %s54, %s55
      %p67 = scmp.eq.s32.totalorder %s24, 1
      %p68 = por %p66, %p67
      %p70 = scmp.ne.s32.totalorder %s55, %s69
      %p71 = scmp.eq.s32.totalorder %s24, 0
      %p72 = por %p70, %p71
      %s74 = sadd.s32 %s73, 1
      %p77 = scmp.eq.s32.totalorder %s18, 1
      %p78 = scmp.ne.s32.totalorder %s73, %s75
      %p79 = scmp.eq.s32.totalorder %s18, 0
      %p80 = por %p78, %p79
      %p81 = scmp.ne.s32.totalorder %s73, %s75
      %p82 = scmp.eq.s32.totalorder %s23, 1
      %p83 = por %p81, %p82
      %p84 = scmp.ne.s32.totalorder %s75, %s76
      %p85 = scmp.eq.s32.totalorder %s23, 0
      %p86 = por %p84, %p85
      %p87 = scmp.ne.s32.totalorder %s75, %s76
      %p88 = scmp.eq.s32.totalorder %s24, 1
      %p89 = por %p87, %p88
      %p91 = scmp.ne.s32.totalorder %s76, %s90
      %p92 = scmp.eq.s32.totalorder %s24, 0
      %p93 = por %p91, %p92
      %s95 = sadd.s32 %s94, 1
      %p98 = scmp.eq.s32.totalorder %s18, 1
      %p99 = scmp.ne.s32.totalorder %s94, %s96
      %p100 = scmp.eq.s32.totalorder %s18, 0
      %p101 = por %p99, %p100
      %p102 = scmp.ne.s32.totalorder %s94, %s96
      %p103 = scmp.eq.s32.totalorder %s23, 1
      %p104 = por %p102, %p103
      %p105 = scmp.ne.s32.totalorder %s96, %s97
      %p106 = scmp.eq.s32.totalorder %s23, 0
      %p107 = por %p105, %p106
      %p108 = scmp.ne.s32.totalorder %s96, %s97
      %p109 = scmp.eq.s32.totalorder %s24, 1
      %p110 = por %p108, %p109
      %p112 = scmp.ne.s32.totalorder %s97, %s111
      %p113 = scmp.eq.s32.totalorder %s24, 0
      %p114 = por %p112, %p113
      %s116 = sadd.s32 %s115, 1
      %p119 = scmp.eq.s32.totalorder %s18, 1
      %p120 = scmp.ne.s32.totalorder %s115, %s117
      %p121 = scmp.eq.s32.totalorder %s18, 0
      %p122 = por %p120, %p121
      %p123 = scmp.ne.s32.totalorder %s115, %s117
      %p124 = scmp.eq.s32.totalorder %s23, 1
      %p125 = por %p123, %p124
      %p126 = scmp.ne.s32.totalorder %s117, %s118
      %p127 = scmp.eq.s32.totalorder %s23, 0
      %p128 = por %p126, %p127
      %p129 = scmp.ne.s32.totalorder %s117, %s118
      %p130 = scmp.eq.s32.totalorder %s24, 1
      %p131 = por %p129, %p130
      %p133 = scmp.ne.s32.totalorder %s118, %s132
      %p134 = scmp.eq.s32.totalorder %s24, 0
      %p135 = por %p133, %p134
      %s137 = sadd.s32 %s136, 1
      %p140 = scmp.eq.s32.totalorder %s18, 1
      %p141 = scmp.ne.s32.totalorder %s136, %s138
      %p142 = scmp.eq.s32.totalorder %s18, 0
      %p143 = por %p141, %p142
      %p144 = scmp.ne.s32.totalorder %s136, %s138
      %p145 = scmp.eq.s32.totalorder %s23, 1
      %p146 = por %p144, %p145
      %p147 = scmp.ne.s32.totalorder %s138, %s139
      %p148 = scmp.eq.s32.totalorder %s23, 0
      %p149 = por %p147, %p148
      %p150 = scmp.ne.s32.totalorder %s138, %s139
      %p151 = scmp.eq.s32.totalorder %s24, 1
      %p152 = por %p150, %p151
      %p154 = scmp.ne.s32.totalorder %s139, %s153
      %p155 = scmp.eq.s32.totalorder %s24, 0
      %p156 = por %p154, %p155
      %s158 = sadd.s32 %s157, 1
      %p161 = scmp.eq.s32.totalorder %s18, 1
      %p162 = scmp.ne.s32.totalorder %s157, %s159
      %p163 = scmp.eq.s32.totalorder %s18, 0
      %p164 = por %p162, %p163
      %p165 = scmp.ne.s32.totalorder %s157, %s159
      %p166 = scmp.eq.s32.totalorder %s23, 1
      %p167 = por %p165, %p166
      %p168 = scmp.ne.s32.totalorder %s159, %s160
      %p169 = scmp.eq.s32.totalorder %s23, 0
      %p170 = por %p168, %p169
      %p171 = scmp.ne.s32.totalorder %s159, %s160
      %p172 = scmp.eq.s32.totalorder %s24, 1
      %p173 = por %p171, %p172
      %p175 = scmp.ne.s32.totalorder %s160, %s174
      %p176 = scmp.eq.s32.totalorder %s24, 0
      %p177 = por %p175, %p176
      %s179 = sadd.s32 %s178, 1
      %p182 = scmp.eq.s32.totalorder %s18, 1
      %p183 = scmp.ne.s32.totalorder %s178, %s180
      %p184 = scmp.eq.s32.totalorder %s18, 0
      %p185 = por %p183, %p184
      %p186 = scmp.ne.s32.totalorder %s178, %s180
      %p187 = scmp.eq.s32.totalorder %s23, 1
      %p188 = por %p186, %p187
      %p189 = scmp.ne.s32.totalorder %s180, %s181
      %p190 = scmp.eq.s32.totalorder %s23, 0
      %p191 = por %p189, %p190
      %p192 = scmp.ne.s32.totalorder %s180, %s181
      %p193 = scmp.eq.s32.totalorder %s24, 1
      %p194 = por %p192, %p193
      %p196 = scmp.ne.s32.totalorder %s181, %s195
      %p197 = scmp.eq.s32.totalorder %s24, 0
      %p198 = por %p196, %p197
      %s199 = ssub.s32 %s18, %s25
      %p200 = scmp.eq.s32.totalorder %s199, 0
      %s202 = sadd.s32 %s201, 1
      %s203 = scalar_select %p200, %s201, %s202
      %p206 = pneg %p200
      %p207 = scmp.eq.s32.totalorder %s18, 1
      %p208 = por %p206, %p207
      %p209 = scmp.ne.s32.totalorder %s201, %s204
      %p210 = scmp.eq.s32.totalorder %s18, 0
      %p211 = por %p209, %p210
      %p212 = scmp.ne.s32.totalorder %s201, %s204
      %p213 = scmp.eq.s32.totalorder %s23, 1
      %p214 = por %p212, %p213
      %p215 = scmp.ne.s32.totalorder %s204, %s205
      %p216 = scmp.eq.s32.totalorder %s23, 0
      %p217 = por %p215, %p216
      %p218 = scmp.ne.s32.totalorder %s204, %s205
      %p219 = scmp.eq.s32.totalorder %s24, 1
      %p220 = por %p218, %p219
      %p222 = scmp.ne.s32.totalorder %s205, %s221
      %p223 = scmp.eq.s32.totalorder %s24, 0
      %p224 = por %p222, %p223
      %p225 = scmp.le.s32.totalorder 1, %s18
      %p226 = scmp.lt.s32.totalorder %s18, 3
      %p227 = pnand %p225, %p226
      %p228 = pneg %p227
      // Predicated region
      $region9: #{tpu_custom_call.1} parent=5 // pred_check
        _
      $region10: #{tpu_custom_call.1} parent=5 // pred_check_branch
        %230 = sbr.rel (%p227) target = $region12
      $region11: #{tpu_custom_call.1} parent=5 // pred_region
        %s231 = ssub.s32 %s18, 1
        // Predicated region
        $region13: #{tpu_custom_call.1} parent=11 // pred_check
          %p232 = pneg %p65
        $region14: #{tpu_custom_call.1} parent=11 // pred_check_branch
          %234 = sbr.rel (%p232) target = $region16
        $region15: #{tpu_custom_call.1} parent=11 // pred_region
          _
        $region16: #{tpu_custom_call.1} parent=11 // pred_fallthru
          _
        // Predicated region
        $region17: #{tpu_custom_call.1} parent=11 // pred_check
          %p235 = pneg %p86
        $region18: #{tpu_custom_call.1} parent=11 // pred_check_branch
          %237 = sbr.rel (%p235) target = $region20
        $region19: #{tpu_custom_call.1} parent=11 // pred_region
          _
        $region20: #{tpu_custom_call.1} parent=11 // pred_fallthru
          _
        // Predicated region
        $region21: #{tpu_custom_call.1} parent=11 // pred_check
          %p238 = pneg %p107
        $region22: #{tpu_custom_call.1} parent=11 // pred_check_branch
          %240 = sbr.rel (%p238) target = $region24
        $region23: #{tpu_custom_call.1} parent=11 // pred_region
          _
        $region24: #{tpu_custom_call.1} parent=11 // pred_fallthru
          _
        // Predicated region
        $region25: #{tpu_custom_call.1} parent=11 // pred_check
          %p241 = pneg %p128
        $region26: #{tpu_custom_call.1} parent=11 // pred_check_branch
          %243 = sbr.rel (%p241) target = $region28
        $region27: #{tpu_custom_call.1} parent=11 // pred_region
          _
        $region28: #{tpu_custom_call.1} parent=11 // pred_fallthru
          _
        // Predicated region
        $region29: #{tpu_custom_call.1} parent=11 // pred_check
          %p244 = pneg %p149
        $region30: #{tpu_custom_call.1} parent=11 // pred_check_branch
          %246 = sbr.rel (%p244) target = $region32
        $region31: #{tpu_custom_call.1} parent=11 // pred_region
          _
        $region32: #{tpu_custom_call.1} parent=11 // pred_fallthru
          _
        // Predicated region
        $region33: #{tpu_custom_call.1} parent=11 // pred_check
          %p247 = pneg %p170
        $region34: #{tpu_custom_call.1} parent=11 // pred_check_branch
          %249 = sbr.rel (%p247) target = $region36
        $region35: #{tpu_custom_call.1} parent=11 // pred_region
          %s251 = ssub.s32 2048, 2048
          %252 = vsyncadd [#allocation3], %s251
          %s253 = sshll.u32 [#allocation2], 4
          %s254 = int_to_ptr.vmem [resolvable:$true] %s253
          %259 = dma.hbm_to_vmem [thread:$0]  %s6, 2048, %s254, [#allocation3], 128, 128, 8
        $region36: #{tpu_custom_call.1} parent=11 // pred_fallthru
          _
        // Predicated region
        $region37: #{tpu_custom_call.1} parent=11 // pred_check
          %p260 = pneg %p191
        $region38: #{tpu_custom_call.1} parent=11 // pred_check_branch
          %262 = sbr.rel (%p260) target = $region40
        $region39: #{tpu_custom_call.1} parent=11 // pred_region
          _
        $region40: #{tpu_custom_call.1} parent=11 // pred_fallthru
          _
      $region12: #{tpu_custom_call.1} parent=5 // pred_fallthru
        _
      %p263 = scmp.lt.s32.totalorder %s18, 2
      // Predicated region
      $region41: #{tpu_custom_call.1} parent=5 // pred_check
        %p264 = pneg %p263
      $region42: #{tpu_custom_call.1} parent=5 // pred_check_branch
        %266 = sbr.rel (%p264) target = $region44
      $region43: #{tpu_custom_call.1} parent=5 // pred_region
        // Predicated region
        $region45: #{tpu_custom_call.1} parent=43 // pred_check
          %p267 = pneg %p38
        $region46: #{tpu_custom_call.1} parent=43 // pred_check_branch
          %269 = sbr.rel (%p267) target = $region48
        $region47: #{tpu_custom_call.1} parent=43 // pred_region
          %p270 = scmp.lt.s32.totalorder %s18, 1
          %s271 = scalar_select %p270, %s18, 1
          %s272 = smul.addr %s271, 8
          %s273 = scalar_lea.vmem %s0, %s272
        $region48: #{tpu_custom_call.1} parent=43 // pred_fallthru
          _
      $region44: #{tpu_custom_call.1} parent=5 // pred_fallthru
        _
      %p274 = scmp.le.s32.totalorder 1, %s18
      %p275 = scmp.lt.s32.totalorder %s18, 3
      %p276 = pnand %p274, %p275
      %p277 = pneg %p276
      // Predicated region
      $region49: #{tpu_custom_call.1} parent=5 // pred_check
        _
      $region50: #{tpu_custom_call.1} parent=5 // pred_check_branch
        %279 = sbr.rel (%p276) target = $region52
      $region51: #{tpu_custom_call.1} parent=5 // pred_region
        %s280 = ssub.s32 %s18, 1
        // Predicated region
        $region53: #{tpu_custom_call.1} parent=51 // pred_check
          %p281 = pneg %p170
        $region54: #{tpu_custom_call.1} parent=51 // pred_check_branch
          %283 = sbr.rel (%p281) target = $region56
        $region55: #{tpu_custom_call.1} parent=51 // pred_region
          %284 = dma.done [#allocation3], 2048
        $region56: #{tpu_custom_call.1} parent=51 // pred_fallthru
          _
        %p285 = scmp.lt.s32.totalorder %s23, 1
        %s286 = scalar_select %p285, %s23, 1
        %s287 = smul.addr %s286, 8
        %s288 = scalar_lea.vmem %s0, %s287
        %p289 = pneg %p44
        %p290 = pneg %p41
        %p291 = pneg %p65
        %p292 = pneg %p62
        %p293 = pneg %p86
        %p294 = pneg %p83
        %p295 = pneg %p107
        %p296 = pneg %p104
        %p297 = pneg %p128
        %p298 = pneg %p125
        %p299 = pneg %p149
        %p300 = pneg %p146
        %p301 = pneg %p170
        %p302 = pneg %p167
        %p303 = pneg %p191
        %p304 = pneg %p188
        %p305 = pneg %p217
        %p306 = pneg %p214
        %s307 = sand.u32 %s204, 1
        %s308 = scalar_lea.sflag [#allocation4], %s307
        %s309 = sand.u32 %s204, 1
        %s310 = smul.addr %s309, 8
        %s311 = scalar_lea.vmem [#allocation5], %s310
        %p312 = scmp.lt.s32.totalorder %s23, 1
        %s313 = scalar_select %p312, %s23, 1
        %s314 = smul.addr %s313, 8
        %s315 = scalar_lea.vmem %s0, %s314
        %v316 = vld [vmem:[%s315] sm:$0xff]
        %v317 = vld [vmem:[%s1] sm:$0xff]
        %v318 = vld [vmem:[%s1 + $0x8] sm:$0xff]
        %v319 = vld [vmem:[%s1 + $0x10] sm:$0xff]
        %v320 = vld [vmem:[%s1 + $0x18] sm:$0xff]
        %v321 = vld [vmem:[%s1 + $0x20] sm:$0xff]
        %v322 = vld [vmem:[%s1 + $0x28] sm:$0xff]
        %v323 = vld [vmem:[%s1 + $0x30] sm:$0xff]
        %v324 = vld [vmem:[%s1 + $0x38] sm:$0xff]
        %v325 = vld [vmem:[%s1 + $0x40] sm:$0xff]
        %v326 = vld [vmem:[%s1 + $0x48] sm:$0xff]
        %v327 = vld [vmem:[%s1 + $0x50] sm:$0xff]
        %v328 = vld [vmem:[%s1 + $0x58] sm:$0xff]
        %v329 = vld [vmem:[%s1 + $0x60] sm:$0xff]
        %v330 = vld [vmem:[%s1 + $0x68] sm:$0xff]
        %v331 = vld [vmem:[%s1 + $0x70] sm:$0xff]
        %v332 = vld [vmem:[%s1 + $0x78] sm:$0xff]
        %v333 = vld [vmem:[%s2] sm:$0x1]
        %v335 = vlaneseq
        %v336 = vshrl.u32 %v335, 7
        %v337 = vsub.s32 0, %v336
        %v338 = vrot.slane %v333, %v337
        %340 = vmatprep.subr.mxu0 0.0
        %341 = vmatpush1.msra.mxu0 %v317
        %342 = vmatprep.subr.mxu0 0.0
        %343 = vmatpush1.msra.mxu0 %v318
        %344 = vmatprep.subr.mxu0 0.0
        %345 = vmatpush1.msra.mxu0 %v319
        %346 = vmatprep.subr.mxu0 0.0
        %347 = vmatpush1.msra.mxu0 %v320
        %348 = vmatprep.subr.mxu0 0.0
        %349 = vmatpush1.msra.mxu0 %v321
        %350 = vmatprep.subr.mxu0 0.0
        %351 = vmatpush1.msra.mxu0 %v322
        %352 = vmatprep.subr.mxu0 0.0
        %353 = vmatpush1.msra.mxu0 %v323
        %354 = vmatprep.subr.mxu0 0.0
        %355 = vmatpush1.msra.mxu0 %v324
        %356 = vmatprep.subr.mxu0 0.0
        %357 = vmatpush1.msra.mxu0 %v325
        %358 = vmatprep.subr.mxu0 0.0
        %359 = vmatpush1.msra.mxu0 %v326
        %360 = vmatprep.subr.mxu0 0.0
        %361 = vmatpush1.msra.mxu0 %v327
        %362 = vmatprep.subr.mxu0 0.0
        %363 = vmatpush1.msra.mxu0 %v328
        %364 = vmatprep.subr.mxu0 0.0
        %365 = vmatpush1.msra.mxu0 %v329
        %366 = vmatprep.subr.mxu0 0.0
        %367 = vmatpush1.msra.mxu0 %v330
        %368 = vmatprep.subr.mxu0 0.0
        %369 = vmatpush1.msra.mxu0 %v331
        %370 = vmatprep.subr.mxu0 0.0
        %371 = vmatpush1.msra.mxu0 %v332
        %372 = vmatprep.subr.mxu0 0.0
        %373 = vmatpush1.msra.mxu0 0.0
        %374 = vmatprep.subr.mxu0 0.0
        %375 = vmatpush1.msra.mxu0 0.0
        %376 = vmatprep.subr.mxu0 0.0
        %377 = vmatpush1.msra.mxu0 0.0
        %378 = vmatprep.subr.mxu0 0.0
        %379 = vmatpush1.msra.mxu0 0.0
        %380 = vmatprep.subr.mxu0 0.0
        %381 = vmatpush1.msra.mxu0 0.0
        %382 = vmatprep.subr.mxu0 0.0
        %383 = vmatpush1.msra.mxu0 0.0
        %384 = vmatprep.subr.mxu0 0.0
        %385 = vmatpush1.msra.mxu0 0.0
        %386 = vmatprep.subr.mxu0 0.0
        %387 = vmatpush1.msra.mxu0 0.0
        %388 = vmatprep.subr.mxu0 0.0
        %389 = vmatpush1.msra.mxu0 0.0
        %390 = vmatprep.subr.mxu0 0.0
        %391 = vmatpush1.msra.mxu0 0.0
        %392 = vmatprep.subr.mxu0 0.0
        %393 = vmatpush1.msra.mxu0 0.0
        %394 = vmatprep.subr.mxu0 0.0
        %395 = vmatpush1.msra.mxu0 0.0
        %396 = vmatprep.subr.mxu0 0.0
        %397 = vmatpush1.msra.mxu0 0.0
        %398 = vmatprep.subr.mxu0 0.0
        %399 = vmatpush1.msra.mxu0 0.0
        %400 = vmatprep.subr.mxu0 0.0
        %401 = vmatpush1.msra.mxu0 0.0
        %402 = vmatprep.subr.mxu0 0.0
        %403 = vmatpush1.msra.mxu0 0.0
        %404 = vmatprep.mubr.f32.mxu0 0.0
        %405 = vmatmul.mubr.f32.gmra.mrb[0].mxu0 %v316
        %v406 = vpop.f32.mrb[0].mxu0
        %v407 = vadd.f32 %v338, %v406
        %v408 = vpop.f32.mrb[0].mxu0
        %409 = vdwg.mxu0
        %vm410 = vcmask 130048
        %v411 = vsel %vm410, %v407, -inf
        %v412 = vrot.slane %v411, 4
        %v413 = vmax.f32 %v411, %v412
        %v414 = vrot.slane %v413, 2
        %v415 = vmax.f32 %v413, %v414
        %v416 = vrot.slane %v415, 1
        %v417 = vmax.f32 %v415, %v416
        %v418 = vsub.f32 %v407, %v417
        %v419 = vmul.f32 %v418, 1.442695
        %v420 = vpow.pop %v419
        %v421 = vsel %vm410, %v420, 0.0
        %v422 = vrot.slane %v421, 4
        %v423 = vadd.f32 %v421, %v422
        %v424 = vrot.slane %v423, 2
        %v425 = vadd.f32 %v423, %v424
        %v426 = vrot.slane %v425, 1
        %v427 = vadd.f32 %v425, %v426
        %v428 = vrcp.pop %v427
        %v429 = vmul.f32 %v420, %v428
        %v430 = vld [vmem:[%s3] sm:$0xff]
        %v431 = vld [vmem:[%s3 + $0x8] sm:$0xff]
        %v432 = vld [vmem:[%s3 + $0x10] sm:$0xff]
        %v433 = vld [vmem:[%s3 + $0x18] sm:$0xff]
        %v434 = vld [vmem:[%s3 + $0x20] sm:$0xff]
        %v435 = vld [vmem:[%s3 + $0x28] sm:$0xff]
        %v436 = vld [vmem:[%s3 + $0x30] sm:$0xff]
        %v437 = vld [vmem:[%s3 + $0x38] sm:$0xff]
        %v438 = vld [vmem:[%s3 + $0x40] sm:$0xff]
        %v439 = vld [vmem:[%s3 + $0x48] sm:$0xff]
        %v440 = vld [vmem:[%s3 + $0x50] sm:$0xff]
        %v441 = vld [vmem:[%s3 + $0x58] sm:$0xff]
        %v442 = vld [vmem:[%s3 + $0x60] sm:$0xff]
        %v443 = vld [vmem:[%s3 + $0x68] sm:$0xff]
        %v444 = vld [vmem:[%s3 + $0x70] sm:$0xff]
        %v445 = vld [vmem:[%s3 + $0x78] sm:$0xff]
        %v446 = vld [vmem:[%s4] sm:$0x1]
        %v448 = vlaneseq
        %v449 = vshrl.u32 %v448, 7
        %v450 = vsub.s32 0, %v449
        %v451 = vrot.slane %v446, %v450
        %453 = vmatprep.subr.mxu0 0.0
        %454 = vmatpush1.msra.mxu0 %v430
        %455 = vmatprep.subr.mxu0 0.0
        %456 = vmatpush1.msra.mxu0 %v431
        %457 = vmatprep.subr.mxu0 0.0
        %458 = vmatpush1.msra.mxu0 %v432
        %459 = vmatprep.subr.mxu0 0.0
        %460 = vmatpush1.msra.mxu0 %v433
        %461 = vmatprep.subr.mxu0 0.0
        %462 = vmatpush1.msra.mxu0 %v434
        %463 = vmatprep.subr.mxu0 0.0
        %464 = vmatpush1.msra.mxu0 %v435
        %465 = vmatprep.subr.mxu0 0.0
        %466 = vmatpush1.msra.mxu0 %v436
        %467 = vmatprep.subr.mxu0 0.0
        %468 = vmatpush1.msra.mxu0 %v437
        %469 = vmatprep.subr.mxu0 0.0
        %470 = vmatpush1.msra.mxu0 %v438
        %471 = vmatprep.subr.mxu0 0.0
        %472 = vmatpush1.msra.mxu0 %v439
        %473 = vmatprep.subr.mxu0 0.0
        %474 = vmatpush1.msra.mxu0 %v440
        %475 = vmatprep.subr.mxu0 0.0
        %476 = vmatpush1.msra.mxu0 %v441
        %477 = vmatprep.subr.mxu0 0.0
        %478 = vmatpush1.msra.mxu0 %v442
        %479 = vmatprep.subr.mxu0 0.0
        %480 = vmatpush1.msra.mxu0 %v443
        %481 = vmatprep.subr.mxu0 0.0
        %482 = vmatpush1.msra.mxu0 %v444
        %483 = vmatprep.subr.mxu0 0.0
        %484 = vmatpush1.msra.mxu0 %v445
        %485 = vmatprep.subr.mxu0 0.0
        %486 = vmatpush1.msra.mxu0 0.0
        %487 = vmatprep.subr.mxu0 0.0
        %488 = vmatpush1.msra.mxu0 0.0
        %489 = vmatprep.subr.mxu0 0.0
        %490 = vmatpush1.msra.mxu0 0.0
        %491 = vmatprep.subr.mxu0 0.0
        %492 = vmatpush1.msra.mxu0 0.0
        %493 = vmatprep.subr.mxu0 0.0
        %494 = vmatpush1.msra.mxu0 0.0
        %495 = vmatprep.subr.mxu0 0.0
        %496 = vmatpush1.msra.mxu0 0.0
        %497 = vmatprep.subr.mxu0 0.0
        %498 = vmatpush1.msra.mxu0 0.0
        %499 = vmatprep.subr.mxu0 0.0
        %500 = vmatpush1.msra.mxu0 0.0
        %501 = vmatprep.subr.mxu0 0.0
        %502 = vmatpush1.msra.mxu0 0.0
        %503 = vmatprep.subr.mxu0 0.0
        %504 = vmatpush1.msra.mxu0 0.0
        %505 = vmatprep.subr.mxu0 0.0
        %506 = vmatpush1.msra.mxu0 0.0
        %507 = vmatprep.subr.mxu0 0.0
        %508 = vmatpush1.msra.mxu0 0.0
        %509 = vmatprep.subr.mxu0 0.0
        %510 = vmatpush1.msra.mxu0 0.0
        %511 = vmatprep.subr.mxu0 0.0
        %512 = vmatpush1.msra.mxu0 0.0
        %513 = vmatprep.subr.mxu0 0.0
        %514 = vmatpush1.msra.mxu0 0.0
        %515 = vmatprep.subr.mxu0 0.0
        %516 = vmatpush1.msra.mxu0 0.0
        %517 = vmatprep.mubr.f32.mxu0 0.0
        %518 = vmatmul.mubr.f32.gmra.mrb[0].mxu0 %v316
        %v519 = vpop.f32.mrb[0].mxu0
        %v520 = vadd.f32 %v451, %v519
        %v521 = vpop.f32.mrb[0].mxu0
        %522 = vdwg.mxu0
        %v523 = vld [vmem:[%s5] sm:$0xff]
        %v524 = vld [vmem:[%s5 + $0x8] sm:$0xff]
        %v526 = vsel %vm410, %v429, 0
        %528 = vmatprep.subr.mxu0 0.0
        %529 = vmatpush1.msra.mxu0 %v523
        %530 = vmatprep.subr.mxu0 0.0
        %531 = vmatpush1.msra.mxu0 %v524
        %532 = vmatprep.subr.mxu0 0.0
        %533 = vmatpush1.msra.mxu0 0.0
        %534 = vmatprep.subr.mxu0 0.0
        %535 = vmatpush1.msra.mxu0 0.0
        %536 = vmatprep.subr.mxu0 0.0
        %537 = vmatpush1.msra.mxu0 0.0
        %538 = vmatprep.subr.mxu0 0.0
        %539 = vmatpush1.msra.mxu0 0.0
        %540 = vmatprep.subr.mxu0 0.0
        %541 = vmatpush1.msra.mxu0 0.0
        %542 = vmatprep.subr.mxu0 0.0
        %543 = vmatpush1.msra.mxu0 0.0
        %544 = vmatprep.subr.mxu0 0.0
        %545 = vmatpush1.msra.mxu0 0.0
        %546 = vmatprep.subr.mxu0 0.0
        %547 = vmatpush1.msra.mxu0 0.0
        %548 = vmatprep.subr.mxu0 0.0
        %549 = vmatpush1.msra.mxu0 0.0
        %550 = vmatprep.subr.mxu0 0.0
        %551 = vmatpush1.msra.mxu0 0.0
        %552 = vmatprep.subr.mxu0 0.0
        %553 = vmatpush1.msra.mxu0 0.0
        %554 = vmatprep.subr.mxu0 0.0
        %555 = vmatpush1.msra.mxu0 0.0
        %556 = vmatprep.subr.mxu0 0.0
        %557 = vmatpush1.msra.mxu0 0.0
        %558 = vmatprep.subr.mxu0 0.0
        %559 = vmatpush1.msra.mxu0 0.0
        %560 = vmatprep.subr.mxu0 0.0
        %561 = vmatpush1.msra.mxu0 0.0
        %562 = vmatprep.subr.mxu0 0.0
        %563 = vmatpush1.msra.mxu0 0.0
        %564 = vmatprep.subr.mxu0 0.0
        %565 = vmatpush1.msra.mxu0 0.0
        %566 = vmatprep.subr.mxu0 0.0
        %567 = vmatpush1.msra.mxu0 0.0
        %568 = vmatprep.subr.mxu0 0.0
        %569 = vmatpush1.msra.mxu0 0.0
        %570 = vmatprep.subr.mxu0 0.0
        %571 = vmatpush1.msra.mxu0 0.0
        %572 = vmatprep.subr.mxu0 0.0
        %573 = vmatpush1.msra.mxu0 0.0
        %574 = vmatprep.subr.mxu0 0.0
        %575 = vmatpush1.msra.mxu0 0.0
        %576 = vmatprep.subr.mxu0 0.0
        %577 = vmatpush1.msra.mxu0 0.0
        %578 = vmatprep.subr.mxu0 0.0
        %579 = vmatpush1.msra.mxu0 0.0
        %580 = vmatprep.subr.mxu0 0.0
        %581 = vmatpush1.msra.mxu0 0.0
        %582 = vmatprep.subr.mxu0 0.0
        %583 = vmatpush1.msra.mxu0 0.0
        %584 = vmatprep.subr.mxu0 0.0
        %585 = vmatpush1.msra.mxu0 0.0
        %586 = vmatprep.subr.mxu0 0.0
        %587 = vmatpush1.msra.mxu0 0.0
        %588 = vmatprep.subr.mxu0 0.0
        %589 = vmatpush1.msra.mxu0 0.0
        %590 = vmatprep.subr.mxu0 0.0
        %591 = vmatpush1.msra.mxu0 0.0
        %592 = vmatprep.mubr.f32.mxu0 0.0
        %593 = vmatmul.mubr.f32.gmra.mrb[0].mxu0 %v526
        %v594 = vpop.f32.mrb[0].mxu0
        %v595 = vadd.f32 0.0, %v594
        %v596 = vpop.f32.mrb[0].mxu0
        %597 = vdwg.mxu0
        %v598 = vmul.f32 %v595, %v520
        %v599 = vrot.slane %v598, 4
        %v600 = vadd.f32 %v598, %v599
        %v601 = vrot.slane %v600, 2
        %v602 = vadd.f32 %v600, %v601
        %v603 = vrot.slane %v602, 1
        %v604 = vadd.f32 %v602, %v603
        %v605 = vld [vmem:[#allocation2] sm:$0xff]
        %v606 = vld [vmem:[#allocation2 + $0x8] sm:$0xff]
        %v607 = vld [vmem:[#allocation2 + $0x10] sm:$0xff]
        %v608 = vld [vmem:[#allocation2 + $0x18] sm:$0xff]
        %v609 = vld [vmem:[#allocation2 + $0x20] sm:$0xff]
        %v610 = vld [vmem:[#allocation2 + $0x28] sm:$0xff]
        %v611 = vld [vmem:[#allocation2 + $0x30] sm:$0xff]
        %v612 = vld [vmem:[#allocation2 + $0x38] sm:$0xff]
        %v613 = vld [vmem:[#allocation2 + $0x40] sm:$0xff]
        %v614 = vld [vmem:[#allocation2 + $0x48] sm:$0xff]
        %v615 = vld [vmem:[#allocation2 + $0x50] sm:$0xff]
        %v616 = vld [vmem:[#allocation2 + $0x58] sm:$0xff]
        %v617 = vld [vmem:[#allocation2 + $0x60] sm:$0xff]
        %v618 = vld [vmem:[#allocation2 + $0x68] sm:$0xff]
        %v619 = vld [vmem:[#allocation2 + $0x70] sm:$0xff]
        %v620 = vld [vmem:[#allocation2 + $0x78] sm:$0xff]
        %v621 = vld [vmem:[%s7] sm:$0x1]
        %622 = vmatprep.subr.mxu0 0.0
        %623 = vmatpush1.msra.mxu0 %v605
        %624 = vmatprep.subr.mxu0 0.0
        %625 = vmatpush1.msra.mxu0 %v606
        %626 = vmatprep.subr.mxu0 0.0
        %627 = vmatpush1.msra.mxu0 %v607
        %628 = vmatprep.subr.mxu0 0.0
        %629 = vmatpush1.msra.mxu0 %v608
        %630 = vmatprep.subr.mxu0 0.0
        %631 = vmatpush1.msra.mxu0 %v609
        %632 = vmatprep.subr.mxu0 0.0
        %633 = vmatpush1.msra.mxu0 %v610
        %634 = vmatprep.subr.mxu0 0.0
        %635 = vmatpush1.msra.mxu0 %v611
        %636 = vmatprep.subr.mxu0 0.0
        %637 = vmatpush1.msra.mxu0 %v612
        %638 = vmatprep.subr.mxu0 0.0
        %639 = vmatpush1.msra.mxu0 %v613
        %640 = vmatprep.subr.mxu0 0.0
        %641 = vmatpush1.msra.mxu0 %v614
        %642 = vmatprep.subr.mxu0 0.0
        %643 = vmatpush1.msra.mxu0 %v615
        %644 = vmatprep.subr.mxu0 0.0
        %645 = vmatpush1.msra.mxu0 %v616
        %646 = vmatprep.subr.mxu0 0.0
        %647 = vmatpush1.msra.mxu0 %v617
        %648 = vmatprep.subr.mxu0 0.0
        %649 = vmatpush1.msra.mxu0 %v618
        %650 = vmatprep.subr.mxu0 0.0
        %651 = vmatpush1.msra.mxu0 %v619
        %652 = vmatprep.subr.mxu0 0.0
        %653 = vmatpush1.msra.mxu0 %v620
        %654 = vmatprep.subr.mxu0 0.0
        %655 = vmatpush1.msra.mxu0 0.0
        %656 = vmatprep.subr.mxu0 0.0
        %657 = vmatpush1.msra.mxu0 0.0
        %658 = vmatprep.subr.mxu0 0.0
        %659 = vmatpush1.msra.mxu0 0.0
        %660 = vmatprep.subr.mxu0 0.0
        %661 = vmatpush1.msra.mxu0 0.0
        %662 = vmatprep.subr.mxu0 0.0
        %663 = vmatpush1.msra.mxu0 0.0
        %664 = vmatprep.subr.mxu0 0.0
        %665 = vmatpush1.msra.mxu0 0.0
        %666 = vmatprep.subr.mxu0 0.0
        %667 = vmatpush1.msra.mxu0 0.0
        %668 = vmatprep.subr.mxu0 0.0
        %669 = vmatpush1.msra.mxu0 0.0
        %670 = vmatprep.subr.mxu0 0.0
        %671 = vmatpush1.msra.mxu0 0.0
        %672 = vmatprep.subr.mxu0 0.0
        %673 = vmatpush1.msra.mxu0 0.0
        %674 = vmatprep.subr.mxu0 0.0
        %675 = vmatpush1.msra.mxu0 0.0
        %676 = vmatprep.subr.mxu0 0.0
        %677 = vmatpush1.msra.mxu0 0.0
        %678 = vmatprep.subr.mxu0 0.0
        %679 = vmatpush1.msra.mxu0 0.0
        %680 = vmatprep.subr.mxu0 0.0
        %681 = vmatpush1.msra.mxu0 0.0
        %682 = vmatprep.subr.mxu0 0.0
        %683 = vmatpush1.msra.mxu0 0.0
        %684 = vmatprep.subr.mxu0 0.0
        %685 = vmatpush1.msra.mxu0 0.0
        %686 = vmatprep.mubr.f32.mxu0 0.0
        %687 = vmatmul.mubr.f32.gmra.mrb[0].mxu0 %v604
        %v688 = vpop.f32.mrb[0].mxu0
        %v689 = vadd.f32 %v621, %v688
        %v690 = vpop.f32.mrb[0].mxu0
        %691 = vdwg.mxu0
        %v692 = vlaneseq
        %v693 = vshrl.u32 %v692, 7
        %v694 = vsub.s32 0, %v693
        %v695 = vrot.slane %v689, %v694
        %696 = vst [vmem:[%s311] sm:$0xff] %v695
        %s697 = sand.u32 %s204, 1
        %s698 = scalar_lea.sflag [#allocation4], %s697
        %s699 = sand.u32 %s204, 1
        %s700 = smul.addr %s699, 8
        %s701 = scalar_lea.vmem [#allocation5], %s700
        // Predicated region
        $region57: #{tpu_custom_call.1} parent=51 // pred_check
          %p702 = pneg %p214
        $region58: #{tpu_custom_call.1} parent=51 // pred_check_branch
          %704 = sbr.rel (%p702) target = $region60
        $region59: #{tpu_custom_call.1} parent=51 // pred_region
          %s706 = ssub.s32 128, 128
          %707 = vsyncadd %s698, %s706
          %s708 = smul.addr %s23, 128
          %s709 = scalar_lea.hbm %s8, %s708
          %s711 = sshll.u32 %s701, 4
          %s712 = int_to_ptr.vmem [resolvable:$true] %s711
          %714 = dma.vmem_to_hbm [thread:$0]  %s712, 128, %s709, %s698
        $region60: #{tpu_custom_call.1} parent=51 // pred_fallthru
          _
      $region52: #{tpu_custom_call.1} parent=5 // pred_fallthru
        _
      %p715 = scmp.le.s32.totalorder 2, %s18
      // Predicated region
      $region61: #{tpu_custom_call.1} parent=5 // pred_check
        %p716 = pneg %p715
      $region62: #{tpu_custom_call.1} parent=5 // pred_check_branch
        %718 = sbr.rel (%p716) target = $region64
      $region63: #{tpu_custom_call.1} parent=5 // pred_region
        %s719 = ssub.s32 %s18, 2
        // Predicated region
        $region65: #{tpu_custom_call.1} parent=63 // pred_check
          %p720 = pneg %p220
        $region66: #{tpu_custom_call.1} parent=63 // pred_check_branch
          %722 = sbr.rel (%p720) target = $region68
        $region67: #{tpu_custom_call.1} parent=63 // pred_region
          %s723 = sand.u32 %s205, 1
          %s724 = scalar_lea.sflag [#allocation4], %s723
          %s725 = sand.u32 %s205, 1
          %s726 = smul.addr %s725, 8
          %s727 = scalar_lea.vmem [#allocation5], %s726
          %728 = dma.done %s724, 128
        $region68: #{tpu_custom_call.1} parent=63 // pred_fallthru
          _
      $region64: #{tpu_custom_call.1} parent=5 // pred_fallthru
        _
    $region6: #{tpu_custom_call.1} parent=1 // loop_footer
      %s22 = sadd.s32 1, %s18
    $region7: #{tpu_custom_call.1} parent=1 // loop_footer_branch
      %17 = sbr.rel target = $region3
    $region8: #{tpu_custom_call.1} parent=1 // loop_exit
      _
    %729 = vsyncpa [#allocation3], 1
    %s730 = scalar_lea.sflag [#allocation3], 1
    %731 = vsyncpa %s730, 1
    %732 = vsyncpa [#allocation4], 1
    %s733 = scalar_lea.sflag [#allocation4], 1
    %734 = vsyncpa %s733, 1

</llo_original>
